<compile_context>
chip_gen: v6e
topology: v6e:2x2x1
jax: 0.10.0
libtpu: 0.0.40
codegen_flags: <defaults>
</compile_context>

<pallas_src>
import functools

import jax
import jax.numpy as jnp
from jax.experimental import pallas as pl
from jax.experimental.pallas import tpu as pltpu


def _round_up(x: int, m: int) -> int:
    return ((x + m - 1) // m) * m


def _argmax_idx_kernel(x_ref, o_ref, *, n_classes: int):
    """One row tile: o[0, t] = argmax_{c < n_classes} x[t, c] (int32, first-occurrence)."""
    x = x_ref[...]
    # Keep native f32/bf16 compute (bf16 halves VPU/XLU work on v6e/v7x; Mosaic
    # handles bf16 on v5e).  Anything else upcasts to f32.
    if not (x.dtype == jnp.float32 or x.dtype == jnp.bfloat16):
        x = x.astype(jnp.float32)
    tb, fu = x.shape

    # One vreg-row of column indices; broadcast in the compares (no full-tile iota).
    col = jax.lax.broadcasted_iota(jnp.int32, (1, fu), 1)                # (1, FU)

    # Lane-mask unused columns only when some exist (static Python branch).
    if n_classes < fu:
        x = jnp.where(col < n_classes, x, jnp.asarray(-jnp.inf, dtype=x.dtype))

    # argmax along lanes with first-occurrence tie-break (matches torch.argmax):
    #   reduction 1: row max;  reduction 2: min column index where x == max.
    mx = jnp.max(x, axis=1, keepdims=True)                               # (TB, 1)
    idx = jnp.min(jnp.where(x == mx, col, fu), axis=1, keepdims=True)    # (TB, 1)
    # TODO(synk): rows containing NaN — torch.argmax returns the NaN position; here
    # the equality mask is empty and we clamp to the last valid class instead.
    idx = jnp.minimum(idx, n_classes - 1)

    # Lane-dense store: (TB, 1) -> (1, TB) transpose (XLU slot, hidden under DMA).
    o_ref[...] = jnp.transpose(idx)


def _pick_block_b(B: int, f_used: int, itemsize: int) -> int:
    """Row-tile size from a VMEM model that counts the double-buffered native-dtype
    input tile plus ~2 f32-width full-tile temporaries (masked copy / packed where),
    so large tiles stay safe on v7x's 64 MiB VMEM.  Multi-tile sizes are multiples
    of 128 (lane-dense output tiles) and balanced across the grid."""
    per_row = f_used * (2 * itemsize + 2 * 4)
    bb = max(128, min((18 << 20) // per_row, 8192))
    if bb >= B:
        if B >= 2048:
            # v7x has 2 TensorCores: give the 'parallel' grid at least 2 tiles.
            return _round_up((B + 1) // 2, 128)
        return B                                   # single tile: block dim == full dim
    num_tiles = -(-B // bb)
    return _round_up(-(-B // num_tiles), 128)      # balance tiles across the grid


def single_class_output(x: jax.Array, classes: jax.Array, n_classes: int,
                        *, block_b: int | None = None) -> jax.Array:
    """Equivalent of `_SingleClassOutput(n_classes, classes).forward(x)`."""
    B, F = x.shape
    n_classes = int(n_classes)
    assert 1 <= n_classes <= F

    classes = jnp.asarray(classes).reshape(-1)[:n_classes]

    # Only move the columns the kernel needs: first round_up(n_classes, 128) of them
    # (a BlockSpec lane dim must be a multiple of 128 or the full F).
    c128 = _round_up(n_classes, 128)
    f_used = c128 if c128 <= F else F

    itemsize = jnp.dtype(x.dtype).itemsize
    if block_b is None:
        block_b = _pick_block_b(B, f_used, itemsize)
    else:
        block_b = int(block_b)
        block_b = B if block_b >= B else max(128, (block_b // 128) * 128)

    num_tiles = -(-B // block_b)   # cdiv; NO x padding — boundary tile rows trimmed.

    # Scoped-VMEM limit: above v5e's 16 MiB default, adaptive for huge n_classes,
    # below v7x's 64 MiB physical VMEM.
    est = block_b * f_used * (2 * itemsize + 8) + (1 << 20)
    vmem_limit = int(min(max(32 << 20, est), 60 << 20))

    kernel = functools.partial(_argmax_idx_kernel, n_classes=n_classes)

    idx_row = pl.pallas_call(
        kernel,
        out_shape=jax.ShapeDtypeStruct((1, num_tiles * block_b), jnp.int32),
        grid_spec=pltpu.PrefetchScalarGridSpec(
            num_scalar_prefetch=0,
            grid=(num_tiles,),
            in_specs=[
                # x streamed in native dtype; lane-block 0 only -> skips unused cols.
                pl.BlockSpec((block_b, f_used), lambda i: (i, 0)),
            ],
            # Lane-dense output: one (1, block_b) slice of a single int32 row.
            out_specs=pl.BlockSpec((1, block_b), lambda i: (0, i)),
        ),
        compiler_params=pltpu.CompilerParams(
            dimension_semantics=("parallel",),     # shard row tiles across TCs (v7x)
            vmem_limit_bytes=vmem_limit,
        ),
    )(x)

    idx = idx_row[0, :B]
    # Exact-dtype label gather outside the kernel: B int32 reads from an
    # n_classes-entry table (negligible HBM traffic), preserves the classes dtype.
    return classes[idx]


if __name__ == "__main__":
    key = jax.random.PRNGKey(0)
    k1, k2, k3 = jax.random.split(key, 3)

    # --- test 1: float classes, small F (block last dim == full F), single tile ----
    B, F, n_classes = 8, 8, 5
    x = jax.random.uniform(k1, (B, F), dtype=jnp.float32)
    classes = jnp.array([10.0, 20.0, 30.0, 40.0, 50.0], dtype=jnp.float32)

    out = jax.block_until_ready(single_class_output(x, classes, n_classes))
    ref = classes[jnp.argmax(x[:, :n_classes], axis=1)]
    assert out.shape == (B,) and out.dtype == classes.dtype
    assert jnp.array_equal(out, ref), (out, ref)

    # --- test 2: int classes + bf16 input + F > 128 (column pruning, native bf16
    #             compute, exact integer labels via wrapper gather) -----------------
    B2, F2, n2 = 24, 160, 3
    x2 = jax.random.uniform(k2, (B2, F2), dtype=jnp.float32).astype(jnp.bfloat16)
    classes2 = jnp.array([7, 3, 11], dtype=jnp.int32)

    out2 = jax.block_until_ready(single_class_output(x2, classes2, n2))
    ref2 = classes2[jnp.argmax(x2[:, :n2].astype(jnp.float32), axis=1)]
    assert out2.shape == (B2,) and out2.dtype == classes2.dtype
    assert jnp.array_equal(out2, ref2), (out2, ref2)

    # --- test 3: ragged multi-tile grid (no wrapper pad, boundary-tile trim) +
    #             in-kernel lane masking (n_classes < f_used == F) ------------------
    B3, F3, n3 = 300, 200, 131
    x3 = jax.random.normal(k3, (B3, F3), dtype=jnp.float32)
    classes3 = jnp.arange(100, 100 + n3, dtype=jnp.int32)

    out3 = jax.block_until_ready(single_class_output(x3, classes3, n3, block_b=128))
    ref3 = classes3[jnp.argmax(x3[:, :n3], axis=1)]
    assert out3.shape == (B3,) and out3.dtype == classes3.dtype
    assert jnp.array_equal(out3, ref3), (out3, ref3)

    print("KERNEL_OK")
</pallas_src>

<mosaic_0001>
module attributes {stable_mosaic.version = 11 : i64} {
  func.func @_argmax_idx_kernel(%arg0: i32, %arg1: memref<8x8xf32, #tpu.memory_space<vmem>>, %arg2: memref<1x8xi32, #tpu.memory_space<vmem>>) attributes {dimension_semantics = [#tpu.dimension_semantics<parallel>], iteration_bounds = array<i64: 1>, scalar_prefetch = 0 : i64, scratch_operands = 0 : i64, tpu.core_type = #tpu.core_type<tc>, window_params = [{transform_indices = @transform_0, window_bounds = array<i64: 8, 8>}, {transform_indices = @transform_1, window_bounds = array<i64: 1, 8>}]} {
    %c0 = arith.constant 0 : index
    %c0_0 = arith.constant 0 : index
    %0 = vector.load %arg1[%c0, %c0_0] : memref<8x8xf32, #tpu.memory_space<vmem>>, vector<8x8xf32>
    %1 = tpu.iota {dimensions = array<i32: 1>} : vector<1x8xi32>
    %c5_i32 = arith.constant 5 : i32
    %2 = vector.broadcast %c5_i32 : i32 to vector<1x8xi32>
    %3 = arith.cmpi slt, %1, %2 : vector<1x8xi32>
    %cst = arith.constant 0xFF800000 : f32
    %4 = vector.shape_cast %3 : vector<1x8xi1> to vector<1x8xi1>
    %5 = vector.broadcast %4 : vector<1x8xi1> to vector<8x8xi1>
    %6 = vector.broadcast %cst : f32 to vector<8x8xf32>
    %7 = arith.select %5, %0, %6 : vector<8x8xi1>, vector<8x8xf32>
    %cst_1 = arith.constant dense<0xFF800000> : vector<8xf32>
    %8 = vector.multi_reduction <maximumf>, %7, %cst_1 [1] : vector<8x8xf32> to vector<8xf32>
    %9 = vector.shape_cast %8 : vector<8xf32> to vector<8x1xf32>
    %10 = vector.broadcast %9 : vector<8x1xf32> to vector<8x8xf32>
    %11 = arith.cmpf oeq, %7, %10 : vector<8x8xf32>
    %c8_i32 = arith.constant 8 : i32
    %12 = vector.shape_cast %1 : vector<1x8xi32> to vector<1x8xi32>
    %13 = vector.broadcast %12 : vector<1x8xi32> to vector<8x8xi32>
    %14 = vector.broadcast %c8_i32 : i32 to vector<8x8xi32>
    %15 = arith.select %11, %13, %14 : vector<8x8xi1>, vector<8x8xi32>
    %cst_2 = arith.constant dense<2147483647> : vector<8xi32>
    %16 = vector.multi_reduction <minsi>, %15, %cst_2 [1] : vector<8x8xi32> to vector<8xi32>
    %17 = vector.shape_cast %16 : vector<8xi32> to vector<8x1xi32>
    %c4_i32 = arith.constant 4 : i32
    %18 = vector.broadcast %c4_i32 : i32 to vector<8x1xi32>
    %19 = arith.minsi %17, %18 : vector<8x1xi32>
    %20 = tpu.transpose %19, [1, 0] : vector<8x1xi32> -> vector<1x8xi32>
    %c0_3 = arith.constant 0 : index
    %c0_4 = arith.constant 0 : index
    %21 = vector.load %arg2[%c0_3, %c0_4] : memref<1x8xi32, #tpu.memory_space<vmem>>, vector<1x8xi32>
    tpu.vector_store %arg2[%c0_3, %c0_4], %20 {strides = array<i32>} : memref<1x8xi32, #tpu.memory_space<vmem>>, vector<1x8xi32>,
    return
  }
  func.func @transform_0(%arg0: i32) -> (i32, i32) {
    %c0_i32 = arith.constant 0 : i32
    %c0_i32_0 = arith.constant 0 : i32
    return %arg0, %c0_i32 : i32, i32
  }
  func.func @transform_1(%arg0: i32) -> (i32, i32) {
    %c0_i32 = arith.constant 0 : i32
    %c0_i32_0 = arith.constant 0 : i32
    return %c0_i32, %arg0 : i32, i32
  }
}

</mosaic_0001>

<llo_original>
// kernel: tpu_custom_call.1
$region0: #{tpu_custom_call.1}
  #allocation0 [shape = 'u32[]', space=smem, size = 0x4, offset = 0x4, fixed_abs, tag = 'smem constant byte address 0x4 - core index']
  #allocation1 [shape = 'u32[144,128]{1,0:T(1,128)}', space=vmem, size = 0x12000, scoped, tag = 'internal scratch']
  %s0 = inlined_call_operand.hbm [shape: f32[8,8], index: 0, kind: input, shape index: {}]
  %s1 = inlined_call_operand.hbm [shape: s32[1,8], index: 1, kind: output, shape index: {}]
  %s2 = sld [smem:[#allocation0]]
  $region18: #{tpu_custom_call.1} parent=0
    _
  %s4 = ssub.s32 1, %s2
  %s5 = scalar_select 0, %s4, %s2
  $region1: #{tpu_custom_call.1} parent=0
    #allocation2 [shape = 'u8[4096]{0}', space=vmem, size = 0x1000, scoped, tag = 'input window, operand 0, single buffered']
    #allocation3 [shape = 's32[1]{0}', space=sflag, size = 0x4, scoped, tag = 'scoped memory for tpu_custom_call.1']
    #allocation4 [shape = 's32[1]{0}', space=sflag, size = 0x4, scoped, tag = 'scoped memory for tpu_custom_call.1']
    #allocation5 [shape = 'u8[512]{0}', space=vmem, size = 0x400, scoped, tag = 'output window, operand 0, single buffered']
    %6 = vsyncpa [#allocation3], 0
    %7 = vsyncpa [#allocation4], 0
    // Predicated region
    $region2: #{tpu_custom_call.1} parent=1 // pred_check
      _
    $region3: #{tpu_custom_call.1} parent=1 // pred_check_branch
      %9 = sbr.rel (0) target = $region5
    $region4: #{tpu_custom_call.1} parent=1 // pred_region
      %s11 = ssub.s32 128, 128
      %12 = vsyncadd [#allocation3], %s11
      %s14 = sshll.u32 [#allocation2], 4
      %s15 = int_to_ptr.vmem [resolvable:$true] %s14
      %17 = dma.hbm_to_vmem [thread:$0]  %s0, 128, %s15, [#allocation3]
    $region5: #{tpu_custom_call.1} parent=1 // pred_fallthru
      _
    // Predicated region
    $region6: #{tpu_custom_call.1} parent=1 // pred_check
      _
    $region7: #{tpu_custom_call.1} parent=1 // pred_check_branch
      %19 = sbr.rel (0) target = $region9
    $region8: #{tpu_custom_call.1} parent=1 // pred_region
      %20 = dma.done [#allocation3], 128
    $region9: #{tpu_custom_call.1} parent=1 // pred_fallthru
      _
    %v21 = vld [vmem:[#allocation2] sm:$0xff]
    %v22 = vlaneseq
    %v23 = vand.u32 %v22, 127
    %vm24 = vcmp.lt.s32.totalorder %v23, 5
    %v25 = vsel %vm24, 1, 0
    %vm26 = vcmp.eq.s32.totalorder %v25, 1
    %v27 = vsel %vm26, %v21, -inf
    %vm28 = vcmask 64512
    %v29 = vsel %vm28, %v27, -inf
    %30 = vmax.xlane.f32.xlu0 %v29
    %v31 = vpop.xlane.xlu0 %30
    %vm32 = vcmp.eq.f32.partialorder %v27, %v31
    %v33 = vsel %vm32, %v23, 8
    %v34 = vsel %vm28, %v33, 2147483647
    %v35 = vand.u32 %v34, 65535
    %v36 = vshra.s32 %v34, 16
    %v37 = vcvt.s32.f32 %v35
    %v38 = vcvt.s32.f32 %v36
    %39 = vmin.xlane.f32.xlu0 %v38
    %v40 = vpop.xlane.xlu0 %39
    %vm41 = vcmp.eq.f32.partialorder %v38, %v40
    %v42 = vsel %vm41, %v37, inf
    %43 = vmin.xlane.f32.xlu0 %v42
    %v44 = vpop.xlane.xlu0 %43
    %v45 = vcvt.f32.s32 %v44
    %v46 = vcvt.f32.s32 %v40
    %v47 = vshll.u32 %v46, 16
    %v48 = vadd.s32 %v47, %v45
    %vm49 = vcmp.lt.s32.totalorder %v48, 4
    %v50 = vsel %vm49, %v48, 4
    %51 = vxpose.xlu0.b32.start [1/16] %v50, 128
    %52 = vxpose.xlu0.b32.cont [2/16] 0, 128
    %53 = vxpose.xlu0.b32.cont [3/16] 0, 128
    %54 = vxpose.xlu0.b32.cont [4/16] 0, 128
    %55 = vxpose.xlu0.b32.cont [5/16] 0, 128
    %56 = vxpose.xlu0.b32.cont [6/16] 0, 128
    %57 = vxpose.xlu0.b32.cont [7/16] 0, 128
    %58 = vxpose.xlu0.b32.cont [8/16] 0, 128
    %59 = vxpose.xlu0.b32.cont [9/16] 0, 128
    %60 = vxpose.xlu0.b32.cont [10/16] 0, 128
    %61 = vxpose.xlu0.b32.cont [11/16] 0, 128
    %62 = vxpose.xlu0.b32.cont [12/16] 0, 128
    %63 = vxpose.xlu0.b32.cont [13/16] 0, 128
    %64 = vxpose.xlu0.b32.cont [14/16] 0, 128
    %65 = vxpose.xlu0.b32.cont [15/16] 0, 128
    %66 = vxpose.xlu0.b32.end [16/16] 0, 128
    %v67 = vpop.trf.xlu0
    %v68 = vpop.trf.xlu0
    %v69 = vpop.trf.xlu0
    %v70 = vpop.trf.xlu0
    %v71 = vpop.trf.xlu0
    %v72 = vpop.trf.xlu0
    %v73 = vpop.trf.xlu0
    %v74 = vpop.trf.xlu0
    %v75 = vpop.trf.xlu0
    %v76 = vpop.trf.xlu0
    %v77 = vpop.trf.xlu0
    %v78 = vpop.trf.xlu0
    %v79 = vpop.trf.xlu0
    %v80 = vpop.trf.xlu0
    %v81 = vpop.trf.xlu0
    %v82 = vpop.trf.xlu0
    %vm83 = vcmask 57344
    %84 = vst.msk [vmem:[#allocation5] sm:$0x1] %vm83, %v67
    // Predicated region
    $region10: #{tpu_custom_call.1} parent=1 // pred_check
      _
    $region11: #{tpu_custom_call.1} parent=1 // pred_check_branch
      %86 = sbr.rel (0) target = $region13
    $region12: #{tpu_custom_call.1} parent=1 // pred_region
      %s88 = ssub.s32 16, 16
      %89 = vsyncadd [#allocation4], %s88
      %s91 = sshll.u32 [#allocation5], 4
      %s92 = int_to_ptr.vmem [resolvable:$true] %s91
      %94 = dma.vmem_to_hbm [thread:$0]  %s92, 16, %s1, [#allocation4]
    $region13: #{tpu_custom_call.1} parent=1 // pred_fallthru
      _
    // Predicated region
    $region14: #{tpu_custom_call.1} parent=1 // pred_check
      _
    $region15: #{tpu_custom_call.1} parent=1 // pred_check_branch
      %96 = sbr.rel (0) target = $region17
    $region16: #{tpu_custom_call.1} parent=1 // pred_region
      %97 = dma.done [#allocation4], 16
    $region17: #{tpu_custom_call.1} parent=1 // pred_fallthru
      _
    %98 = vsyncpa [#allocation3], 1
    %99 = vsyncpa [#allocation4], 1

</llo_original>
